<compile_context>
chip_gen: v7x
topology: tpu7x:2x2x1
jax: 0.10.0
libtpu: 0.0.40
codegen_flags: <defaults>
</compile_context>

<pallas_src>
import jax
import jax.numpy as jnp
from jax.experimental import pallas as pl
from jax.experimental.pallas import tpu as pltpu


# ----------------------------------------------------------------------------- kernel
def _fused_mlp_kernel(x_ref, w1_ref, b1_ref, w2_ref, b2_ref, o_ref):
    """Fused 2-layer MLP over all heads at once (block-diagonal weights).

    x:(tm, Din_total) -> h = relu(x @ W1 + b1):(tm, H_total)
                       -> y = h @ W2 + b2      :(tm, Dout_total)
    """
    x = x_ref[...]
    h = jnp.dot(x, w1_ref[...], preferred_element_type=jnp.float32)
    h = jnp.maximum(h + b1_ref[...], 0.0)                 # bias + ReLU in f32 (VPU)
    y = jnp.dot(h.astype(w2_ref.dtype), w2_ref[...],
                preferred_element_type=jnp.float32)
    o_ref[...] = (y + b2_ref[...]).astype(o_ref.dtype)


def _round_up(x, m):
    return (x + m - 1) // m * m


# ----------------------------------------------------------------------------- wrapper
def fused_mlp(x2d, w1, b1, w2, b2, *, tm=512, out_dtype=None,
              vmem_limit_bytes=48 * 1024 * 1024):
    """(M, Din) -> (M, Dout) fused 2-layer MLP, tiled over rows of M.

    Pads M up to a multiple of the row tile (padding rows are discarded by the
    caller), so arbitrary B*S values are supported.
    """
    M, Din = x2d.shape
    H = w1.shape[1]
    Dout = w2.shape[1]
    if out_dtype is None:
        out_dtype = x2d.dtype
    bytes_el = jnp.dtype(x2d.dtype).itemsize

    # ---- pick the row tile --------------------------------------------------
    m8 = _round_up(M, 8)                         # sublane granularity
    tm_eff = max(8, min(tm, m8))
    tm_eff = _round_up(tm_eff, 8)

    # VMEM estimate per grid step: double-buffered x/out tiles, the hidden
    # intermediate, and the (resident but double-buffered) weights + biases.
    def _step_bytes(t):
        return ((2 * t * Din + 2 * t * Dout + t * H) * bytes_el
                + 2 * (Din * H + H * Dout + H + Dout) * 4)

    budget = int(vmem_limit_bytes * 0.6)
    while tm_eff > 64 and _step_bytes(tm_eff) > budget:
        tm_eff //= 2
    tm_eff = max(8, _round_up(tm_eff, 8))

    # v7x megacore: keep a few grid steps so both TensorCores get work.
    while tm_eff >= 512 and _round_up(m8, tm_eff) // tm_eff < 8:
        tm_eff //= 2

    M_pad = _round_up(m8, tm_eff)
    if M_pad != M:
        x2d = jnp.pad(x2d, ((0, M_pad - M), (0, 0)))

    b1 = b1.reshape(1, H).astype(jnp.float32)
    b2 = b2.reshape(1, Dout).astype(jnp.float32)

    grid_spec = pltpu.PrefetchScalarGridSpec(
        num_scalar_prefetch=0,
        grid=(M_pad // tm_eff,),
        in_specs=[
            pl.BlockSpec((tm_eff, Din), lambda i: (i, 0)),   # x row tile
            pl.BlockSpec((Din, H), lambda i: (0, 0)),        # W1 (resident)
            pl.BlockSpec((1, H), lambda i: (0, 0)),          # b1
            pl.BlockSpec((H, Dout), lambda i: (0, 0)),       # W2 (resident)
            pl.BlockSpec((1, Dout), lambda i: (0, 0)),       # b2
        ],
        out_specs=pl.BlockSpec((tm_eff, Dout), lambda i: (i, 0)),
    )

    y = pl.pallas_call(
        _fused_mlp_kernel,
        out_shape=jax.ShapeDtypeStruct((M_pad, Dout), out_dtype),
        grid_spec=grid_spec,
        compiler_params=pltpu.CompilerParams(
            dimension_semantics=("parallel",),
            vmem_limit_bytes=vmem_limit_bytes),
    )(x2d, w1, b1, w2, b2)

    return y[:M]


def projection_forward(xs, params, *, tm=512, use_bf16=False):
    """xs: list of (B, S, in_dim_i) arrays -> (B, n_heads, S, out_dim).

    All heads run in a single pallas_call: inputs concatenated on the feature
    axis, block-diagonal W1/W2, concatenated biases.  The block-diagonal
    structure keeps heads independent, so the result equals running each head's
    MLP separately.
    """
    n_heads = len(xs)
    assert n_heads == len(params)
    B, S, _ = xs[0].shape
    M = B * S
    out_dtype = xs[0].dtype

    # n_layers == 2, layer_norm == False path of the reference module.
    # TODO(synk): layer_norm=True and n_layers != 2 variants not implemented
    # (module defaults are layer_norm=False, n_layers=2).
    w1s, b1s, w2s, b2s = [], [], [], []
    for head in params:
        (w1, b1), (w2, b2) = head
        w1s.append(w1); b1s.append(b1); w2s.append(w2); b2s.append(b2)
    H = w1s[0].shape[1]
    Dout = w2s[0].shape[1]

    x_cat = jnp.concatenate([x.reshape(M, x.shape[-1]) for x in xs], axis=-1)
    w1_bd = jax.scipy.linalg.block_diag(*w1s)        # (sum(in_dims), n_heads*H)
    w2_bd = jax.scipy.linalg.block_diag(*w2s)        # (n_heads*H, n_heads*Dout)
    b1_cat = jnp.concatenate(b1s)                    # (n_heads*H,)
    b2_cat = jnp.concatenate(b2s)                    # (n_heads*Dout,)

    if use_bf16:
        # Halve HBM traffic for activations/weights; accumulation and the
        # bias+ReLU stay in f32 inside the kernel.
        x_cat = x_cat.astype(jnp.bfloat16)
        w1_bd = w1_bd.astype(jnp.bfloat16)
        w2_bd = w2_bd.astype(jnp.bfloat16)

    y = fused_mlp(x_cat, w1_bd, b1_cat, w2_bd, b2_cat, tm=tm,
                  out_dtype=out_dtype)               # (M, n_heads*Dout)
    y = y.reshape(B, S, n_heads, Dout)
    return jnp.transpose(y, (0, 2, 1, 3))            # (B, n_heads, S, Dout)


# ----------------------------------------------------------------------------- init / reference
def init_projection_params(key, in_dims, hidden_dim, out_dim, n_layers=2,
                           dtype=jnp.float32):
    """Deterministic PyTorch-style (U(-1/sqrt(fan_in), 1/sqrt(fan_in))) init."""
    params = []
    for in_dim_i in in_dims:
        head = []
        for layer_i in range(n_layers):
            _in = hidden_dim if layer_i > 0 else in_dim_i
            _out = out_dim if layer_i == n_layers - 1 else hidden_dim
            key, kw, kb = jax.random.split(key, 3)
            bound = 1.0 / jnp.sqrt(_in)
            w = jax.random.uniform(kw, (_in, _out), dtype, -bound, bound)
            b = jax.random.uniform(kb, (_out,), dtype, -bound, bound)
            head.append((w, b))
        params.append(head)
    return params


def _reference_forward(xs, params):
    outs = []
    for x_i, head in zip(xs, params):
        (w1, b1), (w2, b2) = head
        h = jnp.maximum(jnp.einsum("bsd,dh->bsh", x_i, w1) + b1, 0.0)
        y = jnp.einsum("bsh,ho->bso", h, w2) + b2
        outs.append(y[:, None])
    return jnp.concatenate(outs, axis=1)


if __name__ == "__main__":
    B, S = 2, 8
    in_dims = [64, 128]          # two heads with different input dims
    hidden_dim, out_dim = 32, 32

    key = jax.random.PRNGKey(0)
    key, kp = jax.random.split(key)
    params = init_projection_params(kp, in_dims, hidden_dim, out_dim)

    xs = []
    for d in in_dims:
        key, kx = jax.random.split(key)
        xs.append(jax.random.normal(kx, (B, S, d), jnp.float32))

    out = projection_forward(xs, params, tm=512)
    out = jax.block_until_ready(out)

    ref = _reference_forward(xs, params)
    assert out.shape == (B, len(in_dims), S, out_dim), out.shape
    assert jnp.allclose(out, ref, atol=1e-5, rtol=1e-5), "mismatch vs reference"

    print("KERNEL_OK")
</pallas_src>

<mosaic_0001>
module attributes {stable_mosaic.version = 11 : i64} {
  func.func @_fused_mlp_kernel(%arg0: i32, %arg1: memref<16x192xf32, #tpu.memory_space<vmem>>, %arg2: memref<192x64xf32, #tpu.memory_space<vmem>>, %arg3: memref<1x64xf32, #tpu.memory_space<vmem>>, %arg4: memref<64x64xf32, #tpu.memory_space<vmem>>, %arg5: memref<1x64xf32, #tpu.memory_space<vmem>>, %arg6: memref<16x64xf32, #tpu.memory_space<vmem>>) attributes {dimension_semantics = [#tpu.dimension_semantics<parallel>], iteration_bounds = array<i64: 1>, scalar_prefetch = 0 : i64, scratch_operands = 0 : i64, tpu.core_type = #tpu.core_type<tc>, window_params = [{transform_indices = @transform_0, window_bounds = array<i64: 16, 192>}, {pipeline_mode = #tpu.pipeline_mode<synchronous>, transform_indices = @transform_1, window_bounds = array<i64: 192, 64>}, {pipeline_mode = #tpu.pipeline_mode<synchronous>, transform_indices = @transform_2, window_bounds = array<i64: 1, 64>}, {pipeline_mode = #tpu.pipeline_mode<synchronous>, transform_indices = @transform_3, window_bounds = array<i64: 64, 64>}, {pipeline_mode = #tpu.pipeline_mode<synchronous>, transform_indices = @transform_4, window_bounds = array<i64: 1, 64>}, {transform_indices = @transform_5, window_bounds = array<i64: 16, 64>}]} {
    %c0 = arith.constant 0 : index
    %c0_0 = arith.constant 0 : index
    %0 = vector.load %arg1[%c0, %c0_0] : memref<16x192xf32, #tpu.memory_space<vmem>>, vector<16x192xf32>
    %c0_1 = arith.constant 0 : index
    %c0_2 = arith.constant 0 : index
    %1 = vector.load %arg2[%c0_1, %c0_2] : memref<192x64xf32, #tpu.memory_space<vmem>>, vector<192x64xf32>
    %cst = arith.constant dense<0.000000e+00> : vector<16x64xf32>
    %2 = tpu.matmul %0, %1, %cst {dimension_numbers = #tpu.dot_dimension_numbers<[1], [0], [0], [1], [0, 0, 1, 1], [], []>} : vector<16x192xf32>, vector<192x64xf32>, vector<16x64xf32> -> vector<16x64xf32>
    %c0_3 = arith.constant 0 : index
    %c0_4 = arith.constant 0 : index
    %3 = vector.load %arg3[%c0_3, %c0_4] : memref<1x64xf32, #tpu.memory_space<vmem>>, vector<1x64xf32>
    %4 = vector.broadcast %3 : vector<1x64xf32> to vector<16x64xf32>
    %5 = arith.addf %2, %4 : vector<16x64xf32>
    %cst_5 = arith.constant 0.000000e+00 : f32
    %6 = vector.broadcast %cst_5 : f32 to vector<16x64xf32>
    %7 = arith.maximumf %5, %6 : vector<16x64xf32>
    %c0_6 = arith.constant 0 : index
    %c0_7 = arith.constant 0 : index
    %8 = vector.load %arg4[%c0_6, %c0_7] : memref<64x64xf32, #tpu.memory_space<vmem>>, vector<64x64xf32>
    %cst_8 = arith.constant dense<0.000000e+00> : vector<16x64xf32>
    %9 = tpu.matmul %7, %8, %cst_8 {dimension_numbers = #tpu.dot_dimension_numbers<[1], [0], [0], [1], [0, 0, 1, 1], [], []>} : vector<16x64xf32>, vector<64x64xf32>, vector<16x64xf32> -> vector<16x64xf32>
    %c0_9 = arith.constant 0 : index
    %c0_10 = arith.constant 0 : index
    %10 = vector.load %arg5[%c0_9, %c0_10] : memref<1x64xf32, #tpu.memory_space<vmem>>, vector<1x64xf32>
    %11 = vector.broadcast %10 : vector<1x64xf32> to vector<16x64xf32>
    %12 = arith.addf %9, %11 : vector<16x64xf32>
    %c0_11 = arith.constant 0 : index
    %c0_12 = arith.constant 0 : index
    %13 = vector.load %arg6[%c0_11, %c0_12] : memref<16x64xf32, #tpu.memory_space<vmem>>, vector<16x64xf32>
    tpu.vector_store %arg6[%c0_11, %c0_12], %12 {strides = array<i32>} : memref<16x64xf32, #tpu.memory_space<vmem>>, vector<16x64xf32>,
    return
  }
  func.func @transform_0(%arg0: i32) -> (i32, i32) {
    %c0_i32 = arith.constant 0 : i32
    %c0_i32_0 = arith.constant 0 : i32
    return %arg0, %c0_i32 : i32, i32
  }
  func.func @transform_1(%arg0: i32) -> (i32, i32) {
    %c0_i32 = arith.constant 0 : i32
    %c0_i32_0 = arith.constant 0 : i32
    %c0_i32_1 = arith.constant 0 : i32
    return %c0_i32, %c0_i32_0 : i32, i32
  }
  func.func @transform_2(%arg0: i32) -> (i32, i32) {
    %c0_i32 = arith.constant 0 : i32
    %c0_i32_0 = arith.constant 0 : i32
    %c0_i32_1 = arith.constant 0 : i32
    return %c0_i32, %c0_i32_0 : i32, i32
  }
  func.func @transform_3(%arg0: i32) -> (i32, i32) {
    %c0_i32 = arith.constant 0 : i32
    %c0_i32_0 = arith.constant 0 : i32
    %c0_i32_1 = arith.constant 0 : i32
    return %c0_i32, %c0_i32_0 : i32, i32
  }
  func.func @transform_4(%arg0: i32) -> (i32, i32) {
    %c0_i32 = arith.constant 0 : i32
    %c0_i32_0 = arith.constant 0 : i32
    %c0_i32_1 = arith.constant 0 : i32
    return %c0_i32, %c0_i32_0 : i32, i32
  }
  func.func @transform_5(%arg0: i32) -> (i32, i32) {
    %c0_i32 = arith.constant 0 : i32
    %c0_i32_0 = arith.constant 0 : i32
    return %arg0, %c0_i32 : i32, i32
  }
}

</mosaic_0001>

<llo_original>
// kernel: tpu_custom_call.1
$region0: #{tpu_custom_call.1}
  #allocation0 [shape = 'u32[]', space=smem, size = 0x4, offset = 0x4, fixed_abs, tag = 'smem constant byte address 0x4 - core index']
  #allocation1 [shape = 'u32[144,128]{1,0:T(1,128)}', space=vmem, size = 0x12000, scoped, tag = 'internal scratch']
  %s0 = inlined_call_operand.vmem [shape: f32[16,192], index: 0, kind: input, shape index: {}]
  %s1 = inlined_call_operand.vmem [shape: f32[192,64], index: 1, kind: input, shape index: {}]
  %s2 = inlined_call_operand.vmem [shape: f32[1,64], index: 2, kind: input, shape index: {}]
  %s3 = inlined_call_operand.vmem [shape: f32[64,64], index: 3, kind: input, shape index: {}]
  %s4 = inlined_call_operand.vmem [shape: f32[1,64], index: 4, kind: input, shape index: {}]
  %s5 = inlined_call_operand.hbm [shape: f32[16,64], index: 5, kind: output, shape index: {}]
  %s6 = sld [smem:[#allocation0]]
  $region30: #{tpu_custom_call.1} parent=0
    _
  %s8 = ssub.s32 1, %s6
  %s9 = scalar_select 0, %s8, %s6
  $region1: #{tpu_custom_call.1} parent=0
    #allocation2 [shape = 'u8[8192]{0}', space=vmem, size = 0x2000, scoped, tag = 'output window, operand 0, single buffered']
    #allocation3 [shape = 's32[1]{0}', space=sflag, size = 0x4, scoped, tag = 'scoped memory for tpu_custom_call.1']
    %10 = vsyncpa [#allocation3], 0
    // Predicated region
    $region2: #{tpu_custom_call.1} parent=1 // pred_check
      _
    $region3: #{tpu_custom_call.1} parent=1 // pred_check_branch
      %12 = sbr.rel (0) target = $region5
    $region4: #{tpu_custom_call.1} parent=1 // pred_region
      _
    $region5: #{tpu_custom_call.1} parent=1 // pred_fallthru
      _
    // Predicated region
    $region6: #{tpu_custom_call.1} parent=1 // pred_check
      _
    $region7: #{tpu_custom_call.1} parent=1 // pred_check_branch
      %14 = sbr.rel (0) target = $region9
    $region8: #{tpu_custom_call.1} parent=1 // pred_region
      _
    $region9: #{tpu_custom_call.1} parent=1 // pred_fallthru
      _
    // Predicated region
    $region10: #{tpu_custom_call.1} parent=1 // pred_check
      _
    $region11: #{tpu_custom_call.1} parent=1 // pred_check_branch
      %16 = sbr.rel (0) target = $region13
    $region12: #{tpu_custom_call.1} parent=1 // pred_region
      _
    $region13: #{tpu_custom_call.1} parent=1 // pred_fallthru
      _
    // Predicated region
    $region14: #{tpu_custom_call.1} parent=1 // pred_check
      _
    $region15: #{tpu_custom_call.1} parent=1 // pred_check_branch
      %18 = sbr.rel (0) target = $region17
    $region16: #{tpu_custom_call.1} parent=1 // pred_region
      _
    $region17: #{tpu_custom_call.1} parent=1 // pred_fallthru
      _
    // Predicated region
    $region18: #{tpu_custom_call.1} parent=1 // pred_check
      _
    $region19: #{tpu_custom_call.1} parent=1 // pred_check_branch
      %20 = sbr.rel (0) target = $region21
    $region20: #{tpu_custom_call.1} parent=1 // pred_region
      _
    $region21: #{tpu_custom_call.1} parent=1 // pred_fallthru
      _
    %v21 = vld [vmem:[%s0] sm:$0xff]
    %v22 = vld [vmem:[%s0 + $0x8] sm:$0xff]
    %v23 = vld [vmem:[%s0 + $0x10] sm:$0xff]
    %v24 = vld [vmem:[%s0 + $0x18] sm:$0xff]
    %v25 = vld [vmem:[%s1] sm:$0xff]
    %v26 = vld [vmem:[%s1 + $0x8] sm:$0xff]
    %v27 = vld [vmem:[%s1 + $0x10] sm:$0xff]
    %v28 = vld [vmem:[%s1 + $0x18] sm:$0xff]
    %v29 = vld [vmem:[%s1 + $0x20] sm:$0xff]
    %v30 = vld [vmem:[%s1 + $0x28] sm:$0xff]
    %v31 = vld [vmem:[%s1 + $0x30] sm:$0xff]
    %v32 = vld [vmem:[%s1 + $0x38] sm:$0xff]
    %v33 = vld [vmem:[%s1 + $0x40] sm:$0xff]
    %v34 = vld [vmem:[%s1 + $0x48] sm:$0xff]
    %v35 = vld [vmem:[%s1 + $0x50] sm:$0xff]
    %v36 = vld [vmem:[%s1 + $0x58] sm:$0xff]
    %v37 = vld [vmem:[%s1 + $0x60] sm:$0xff]
    %v38 = vld [vmem:[%s1 + $0x68] sm:$0xff]
    %v39 = vld [vmem:[%s1 + $0x70] sm:$0xff]
    %v40 = vld [vmem:[%s1 + $0x78] sm:$0xff]
    %v41 = vld [vmem:[%s1 + $0x80] sm:$0xff]
    %v42 = vld [vmem:[%s1 + $0x88] sm:$0xff]
    %v43 = vld [vmem:[%s1 + $0x90] sm:$0xff]
    %v44 = vld [vmem:[%s1 + $0x98] sm:$0xff]
    %v45 = vld [vmem:[%s1 + $0xa0] sm:$0xff]
    %v46 = vld [vmem:[%s1 + $0xa8] sm:$0xff]
    %v47 = vld [vmem:[%s1 + $0xb0] sm:$0xff]
    %v48 = vld [vmem:[%s1 + $0xb8] sm:$0xff]
    %v49 = vld [vmem:[%s2] sm:$0x1]
    %v51 = vlaneseq
    %v52 = vshrl.u32 %v51, 7
    %v53 = vsub.s32 0, %v52
    %v54 = vrot.slane %v49, %v53
    %vm56 = vcmask 523264
    %v58 = vsel %vm56, %v22, 0
    %v61 = vsel %vm56, %v24, 0
    %63 = vmatprep.subr.mxu0 0.0
    %64 = vmatpush1.msra.mxu0 %v25
    %65 = vmatprep.subr.mxu0 0.0
    %66 = vmatpush1.msra.mxu0 %v26
    %67 = vmatprep.subr.mxu0 0.0
    %68 = vmatpush1.msra.mxu0 %v27
    %69 = vmatprep.subr.mxu0 0.0
    %70 = vmatpush1.msra.mxu0 %v28
    %71 = vmatprep.subr.mxu0 0.0
    %72 = vmatpush1.msra.mxu0 %v29
    %73 = vmatprep.subr.mxu0 0.0
    %74 = vmatpush1.msra.mxu0 %v30
    %75 = vmatprep.subr.mxu0 0.0
    %76 = vmatpush1.msra.mxu0 %v31
    %77 = vmatprep.subr.mxu0 0.0
    %78 = vmatpush1.msra.mxu0 %v32
    %79 = vmatprep.subr.mxu0 0.0
    %80 = vmatpush1.msra.mxu0 %v33
    %81 = vmatprep.subr.mxu0 0.0
    %82 = vmatpush1.msra.mxu0 %v34
    %83 = vmatprep.subr.mxu0 0.0
    %84 = vmatpush1.msra.mxu0 %v35
    %85 = vmatprep.subr.mxu0 0.0
    %86 = vmatpush1.msra.mxu0 %v36
    %87 = vmatprep.subr.mxu0 0.0
    %88 = vmatpush1.msra.mxu0 %v37
    %89 = vmatprep.subr.mxu0 0.0
    %90 = vmatpush1.msra.mxu0 %v38
    %91 = vmatprep.subr.mxu0 0.0
    %92 = vmatpush1.msra.mxu0 %v39
    %93 = vmatprep.subr.mxu0 0.0
    %94 = vmatpush1.msra.mxu0 %v40
    %95 = vmatprep.subr.mxu0 0.0
    %96 = vmatpush1.msra.mxu0 %v41
    %97 = vmatprep.subr.mxu0 0.0
    %98 = vmatpush1.msra.mxu0 %v42
    %99 = vmatprep.subr.mxu0 0.0
    %100 = vmatpush1.msra.mxu0 %v43
    %101 = vmatprep.subr.mxu0 0.0
    %102 = vmatpush1.msra.mxu0 %v44
    %103 = vmatprep.subr.mxu0 0.0
    %104 = vmatpush1.msra.mxu0 %v45
    %105 = vmatprep.subr.mxu0 0.0
    %106 = vmatpush1.msra.mxu0 %v46
    %107 = vmatprep.subr.mxu0 0.0
    %108 = vmatpush1.msra.mxu0 %v47
    %109 = vmatprep.subr.mxu0 0.0
    %110 = vmatpush1.msra.mxu0 %v48
    %111 = vmatprep.subr.mxu0 0.0
    %112 = vmatpush1.msra.mxu0 0.0
    %113 = vmatprep.subr.mxu0 0.0
    %114 = vmatpush1.msra.mxu0 0.0
    %115 = vmatprep.subr.mxu0 0.0
    %116 = vmatpush1.msra.mxu0 0.0
    %117 = vmatprep.subr.mxu0 0.0
    %118 = vmatpush1.msra.mxu0 0.0
    %119 = vmatprep.subr.mxu0 0.0
    %120 = vmatpush1.msra.mxu0 0.0
    %121 = vmatprep.subr.mxu0 0.0
    %122 = vmatpush1.msra.mxu0 0.0
    %123 = vmatprep.subr.mxu0 0.0
    %124 = vmatpush1.msra.mxu0 0.0
    %125 = vmatprep.subr.mxu0 0.0
    %126 = vmatpush1.msra.mxu0 0.0
    %127 = vmatprep.mubr.f32.mxu0 %v58
    %128 = vmatmul.mubr.f32.gmra.mrb[0].mxu0 %v21
    %v129 = vpop.f32.mrb[0].mxu0
    %v130 = vadd.f32 %v54, %v129
    %v131 = vpop.f32.mrb[0].mxu0
    %132 = vmatprep.mubr.f32.mxu0 %v61
    %133 = vmatmul.mubr.f32.gmra.mrb[0].mxu0 %v23
    %v134 = vpop.f32.mrb[0].mxu0
    %v135 = vadd.f32 %v54, %v134
    %v136 = vpop.f32.mrb[0].mxu0
    %137 = vdwg.mxu0
    %v138 = vmax.f32 %v130, 0.0
    %v139 = vmax.f32 %v135, 0.0
    %v140 = vld [vmem:[%s3] sm:$0xff]
    %v141 = vld [vmem:[%s3 + $0x8] sm:$0xff]
    %v142 = vld [vmem:[%s3 + $0x10] sm:$0xff]
    %v143 = vld [vmem:[%s3 + $0x18] sm:$0xff]
    %v144 = vld [vmem:[%s3 + $0x20] sm:$0xff]
    %v145 = vld [vmem:[%s3 + $0x28] sm:$0xff]
    %v146 = vld [vmem:[%s3 + $0x30] sm:$0xff]
    %v147 = vld [vmem:[%s3 + $0x38] sm:$0xff]
    %v148 = vld [vmem:[%s4] sm:$0x1]
    %v150 = vlaneseq
    %v151 = vshrl.u32 %v150, 7
    %v152 = vsub.s32 0, %v151
    %v153 = vrot.slane %v148, %v152
    %v156 = vsel %vm56, %v138, 0
    %v159 = vsel %vm56, %v139, 0
    %161 = vmatprep.subr.mxu0 0.0
    %162 = vmatpush1.msra.mxu0 %v140
    %163 = vmatprep.subr.mxu0 0.0
    %164 = vmatpush1.msra.mxu0 %v141
    %165 = vmatprep.subr.mxu0 0.0
    %166 = vmatpush1.msra.mxu0 %v142
    %167 = vmatprep.subr.mxu0 0.0
    %168 = vmatpush1.msra.mxu0 %v143
    %169 = vmatprep.subr.mxu0 0.0
    %170 = vmatpush1.msra.mxu0 %v144
    %171 = vmatprep.subr.mxu0 0.0
    %172 = vmatpush1.msra.mxu0 %v145
    %173 = vmatprep.subr.mxu0 0.0
    %174 = vmatpush1.msra.mxu0 %v146
    %175 = vmatprep.subr.mxu0 0.0
    %176 = vmatpush1.msra.mxu0 %v147
    %177 = vmatprep.subr.mxu0 0.0
    %178 = vmatpush1.msra.mxu0 0.0
    %179 = vmatprep.subr.mxu0 0.0
    %180 = vmatpush1.msra.mxu0 0.0
    %181 = vmatprep.subr.mxu0 0.0
    %182 = vmatpush1.msra.mxu0 0.0
    %183 = vmatprep.subr.mxu0 0.0
    %184 = vmatpush1.msra.mxu0 0.0
    %185 = vmatprep.subr.mxu0 0.0
    %186 = vmatpush1.msra.mxu0 0.0
    %187 = vmatprep.subr.mxu0 0.0
    %188 = vmatpush1.msra.mxu0 0.0
    %189 = vmatprep.subr.mxu0 0.0
    %190 = vmatpush1.msra.mxu0 0.0
    %191 = vmatprep.subr.mxu0 0.0
    %192 = vmatpush1.msra.mxu0 0.0
    %193 = vmatprep.subr.mxu0 0.0
    %194 = vmatpush1.msra.mxu0 0.0
    %195 = vmatprep.subr.mxu0 0.0
    %196 = vmatpush1.msra.mxu0 0.0
    %197 = vmatprep.subr.mxu0 0.0
    %198 = vmatpush1.msra.mxu0 0.0
    %199 = vmatprep.subr.mxu0 0.0
    %200 = vmatpush1.msra.mxu0 0.0
    %201 = vmatprep.subr.mxu0 0.0
    %202 = vmatpush1.msra.mxu0 0.0
    %203 = vmatprep.subr.mxu0 0.0
    %204 = vmatpush1.msra.mxu0 0.0
    %205 = vmatprep.subr.mxu0 0.0
    %206 = vmatpush1.msra.mxu0 0.0
    %207 = vmatprep.subr.mxu0 0.0
    %208 = vmatpush1.msra.mxu0 0.0
    %209 = vmatprep.subr.mxu0 0.0
    %210 = vmatpush1.msra.mxu0 0.0
    %211 = vmatprep.subr.mxu0 0.0
    %212 = vmatpush1.msra.mxu0 0.0
    %213 = vmatprep.subr.mxu0 0.0
    %214 = vmatpush1.msra.mxu0 0.0
    %215 = vmatprep.subr.mxu0 0.0
    %216 = vmatpush1.msra.mxu0 0.0
    %217 = vmatprep.subr.mxu0 0.0
    %218 = vmatpush1.msra.mxu0 0.0
    %219 = vmatprep.subr.mxu0 0.0
    %220 = vmatpush1.msra.mxu0 0.0
    %221 = vmatprep.subr.mxu0 0.0
    %222 = vmatpush1.msra.mxu0 0.0
    %223 = vmatprep.subr.mxu0 0.0
    %224 = vmatpush1.msra.mxu0 0.0
    %225 = vmatprep.mubr.f32.mxu0 0.0
    %226 = vmatmul.mubr.f32.gmra.mrb[0].mxu0 %v156
    %v227 = vpop.f32.mrb[0].mxu0
    %v228 = vadd.f32 %v153, %v227
    %v229 = vpop.f32.mrb[0].mxu0
    %230 = vmatprep.mubr.f32.mxu0 0.0
    %231 = vmatmul.mubr.f32.gmra.mrb[0].mxu0 %v159
    %v232 = vpop.f32.mrb[0].mxu0
    %v233 = vadd.f32 %v153, %v232
    %v234 = vpop.f32.mrb[0].mxu0
    %235 = vdwg.mxu0
    %236 = vst.msk [vmem:[#allocation2] sm:$0xff] %vm56, %v228
    %237 = vst.msk [vmem:[#allocation2 + $0x8] sm:$0xff] %vm56, %v233
    // Predicated region
    $region22: #{tpu_custom_call.1} parent=1 // pred_check
      _
    $region23: #{tpu_custom_call.1} parent=1 // pred_check_branch
      %239 = sbr.rel (0) target = $region25
    $region24: #{tpu_custom_call.1} parent=1 // pred_region
      %s241 = ssub.s32 256, 256
      %242 = vsyncadd [#allocation3], %s241
      %s243 = sshll.u32 [#allocation2], 4
      %s244 = int_to_ptr.vmem [resolvable:$true] %s243
      %249 = dma.vmem_to_hbm [thread:$0]  %s244, 256, %s5, [#allocation3], 128, 128, 8
    $region25: #{tpu_custom_call.1} parent=1 // pred_fallthru
      _
    // Predicated region
    $region26: #{tpu_custom_call.1} parent=1 // pred_check
      _
    $region27: #{tpu_custom_call.1} parent=1 // pred_check_branch
      %251 = sbr.rel (0) target = $region29
    $region28: #{tpu_custom_call.1} parent=1 // pred_region
      %252 = dma.done [#allocation3], 256
    $region29: #{tpu_custom_call.1} parent=1 // pred_fallthru
      _
    %253 = vsyncpa [#allocation3], 1

</llo_original>
